<compile_context>
chip_gen: v5e
topology: v5e:2x2
jax: 0.10.0
libtpu: 0.0.40
codegen_flags: <defaults>
</compile_context>

<pallas_src>
import functools

import jax
import jax.numpy as jnp
from jax.experimental import pallas as pl
from jax.experimental.pallas import tpu as pltpu

PACK = 4  # frames packed per output row (PACK * n_mels lanes per store)


def _round_up(x, m):
    return -(-x // m) * m


def _vmem_limit(nbytes):
    """Derived per-kernel scoped-VMEM limit (headroom, capped to be v7x-safe)."""
    return int(min(48 * 1024 * 1024, max(16 * 1024 * 1024, 2 * nbytes)))


# ----------------------------------------------------------------------------
# Deterministic "parameter" construction (torchaudio MelSpectrogram defaults:
# hann periodic window, power=2, HTK mel scale, norm=None, f_min=0, f_max=sr/2)
# ----------------------------------------------------------------------------
def hann_window(n_fft):
    n = jnp.arange(n_fft, dtype=jnp.float32)
    return 0.5 - 0.5 * jnp.cos(2.0 * jnp.pi * n / n_fft)


def windowed_dft_basis(n_fft):
    """Hann window folded into a fused cos|sin real-DFT basis.

    The DC bin is dropped (its mel-filterbank row is exactly zero when
    f_min == 0), keeping bins 1..n_fft//2 so the frequency axis is exactly
    128-lane aligned.  Returns (n_fft, 2 * (n_fft//2)), float32.
    """
    nk = n_fft // 2
    win = hann_window(n_fft)[:, None]
    n = jnp.arange(n_fft, dtype=jnp.float32)[:, None]
    k = jnp.arange(1, nk + 1, dtype=jnp.float32)[None, :]
    ang = 2.0 * jnp.pi * n * k / n_fft
    return jnp.concatenate([win * jnp.cos(ang), win * jnp.sin(ang)], axis=1)


def melscale_fbanks(n_freqs, f_min, f_max, n_mels, sample_rate):
    def hz_to_mel(f):
        return 2595.0 * jnp.log10(1.0 + f / 700.0)

    def mel_to_hz(m):
        return 700.0 * (10.0 ** (m / 2595.0) - 1.0)

    all_freqs = jnp.linspace(0.0, sample_rate / 2.0, n_freqs, dtype=jnp.float32)
    m_pts = jnp.linspace(hz_to_mel(jnp.float32(f_min)),
                         hz_to_mel(jnp.float32(f_max)),
                         n_mels + 2, dtype=jnp.float32)
    f_pts = mel_to_hz(m_pts)
    f_diff = f_pts[1:] - f_pts[:-1]                      # (n_mels+1,)
    slopes = f_pts[None, :] - all_freqs[:, None]         # (n_freqs, n_mels+2)
    down = (-slopes[:, :-2]) / f_diff[:-1]
    up = slopes[:, 2:] / f_diff[1:]
    fb = jnp.maximum(0.0, jnp.minimum(down, up))         # (n_freqs, n_mels)
    return fb.astype(jnp.float32)


# ----------------------------------------------------------------------------
# Pallas kernel 1: packed frames -> log(mel-power-spectrogram + eps), packed.
#   fp_ref:    (TILE_R, PACK*n_fft)   bf16 rows of PACK consecutive frames
#   basis_ref: (n_fft, 2*nk)          bf16 window-folded cos|sin basis (DC drop)
#   fb_ref:    (PACK*nk, PACK*n_mels) bf16 block-diagonal mel filterbank
#   out_ref:   (TILE_R, PACK*n_mels)  f32 lane-dense packed log-mel rows
# ----------------------------------------------------------------------------
def melspec_kernel(fp_ref, basis_ref, fb_ref, out_ref, *, eps, n_fft):
    nk = n_fft // 2
    x = fp_ref[...]                                        # (R, PACK*n_fft)
    basis = basis_ref[...]                                 # (n_fft, 2*nk)
    powers = []
    for j in range(PACK):                                  # static unroll
        xj = x[:, j * n_fft:(j + 1) * n_fft]               # (R, n_fft) bf16
        y = jnp.dot(xj, basis, preferred_element_type=jnp.float32)  # (R, 2*nk)
        re = y[:, :nk]
        im = y[:, nk:]
        powers.append(re * re + im * im)                   # (R, nk) f32
    # Lane-pack the PACK power blocks and do ONE matmul against the
    # block-diagonal filterbank: accumulation stays inside the MXU f32
    # accumulator (no extra VPU adds / MXU push-drain sequences).
    power_all = jnp.concatenate(powers, axis=1).astype(jnp.bfloat16)
    mel = jnp.dot(power_all, fb_ref[...], preferred_element_type=jnp.float32)
    out_ref[...] = jnp.log(mel + eps)


# ----------------------------------------------------------------------------
# Pallas kernel 2a: chunked pairwise L1 partial sums.
#   Grid = (n_split, n_half): leading axis "parallel" (2-way when possible so
#   both v7x TensorCores share the reduction), inner axis "arbitrary" over
#   feature chunks.  Cross-lane reduction is deferred: a (B, B, 128) scratch is
#   accumulated with VPU-only adds and reduced over lanes only at finalize.
# ----------------------------------------------------------------------------
def l1_partial_kernel(feat_ref, out_ref, acc_ref):
    step = pl.program_id(1)

    @pl.when(step == 0)
    def _():
        acc_ref[...] = jnp.zeros_like(acc_ref)

    f = feat_ref[...]                                      # (B, f_chunk) f32
    acc = acc_ref[...]                                     # (B, B, 128)  f32
    for g in range(f.shape[1] // 128):                     # static unroll
        fg = f[:, g * 128:(g + 1) * 128]
        acc = acc + jnp.abs(fg[:, None, :] - fg[None, :, :])
    acc_ref[...] = acc

    @pl.when(step == pl.num_programs(1) - 1)
    def _():
        # single cross-lane (XLU) reduce per split, at finalize only
        out_ref[0] = jnp.sum(acc_ref[...], axis=-1)        # (B, B)


# ----------------------------------------------------------------------------
# Pallas kernel 2b: finalize -> scalar loss.
#   Combines the split partial L1 sums, exact latent L2 cdist (direct diff, no
#   Gram-identity cancellation; diagonal is exactly 0), tanh, mean.
# ----------------------------------------------------------------------------
def loss_finalize_kernel(part_ref, lat_ref, out_ref, *, gamma, inv_n_feat):
    audio_dist = jnp.sum(part_ref[...], axis=0) * inv_n_feat      # (B, B)
    lat = lat_ref[...]                                            # (B, D) f32
    d = lat.shape[1]
    d2 = jnp.zeros(audio_dist.shape, dtype=jnp.float32)
    for s in range(0, d, 128):                                    # static unroll
        lc = lat[:, s:min(s + 128, d)]
        dd = lc[:, None, :] - lc[None, :, :]
        d2 = d2 + jnp.sum(dd * dd, axis=-1)
    latent_dist = jnp.sqrt(d2)
    loss = jnp.abs(jnp.tanh(gamma * latent_dist) - audio_dist)
    out_ref[...] = jnp.mean(loss, keepdims=True)                  # (1, 1)


# ----------------------------------------------------------------------------
# Wrapper (plain-JAX glue: reflect pad, framing, parameter setup, trimming)
# ----------------------------------------------------------------------------
def audio_latent_regularizer(audio, latent, *, eps=1.0, gamma=1.0,
                             sample_rate=8000, n_fft=256, hop_length=64,
                             n_mels=32):
    audio = audio.astype(jnp.float32)
    latent = latent.astype(jnp.float32)
    B = audio.shape[0]
    D = latent.shape[1]
    nk = n_fft // 2

    # ---- framing: center=True, pad_mode='reflect'; no XLA gather ------------
    # Cast to bf16 *before* framing so the slices+concat pass writes half the
    # bytes (the kernel accumulates in f32 via preferred_element_type).
    pad = n_fft // 2
    padded = jnp.pad(audio, ((0, 0), (pad, pad)), mode="reflect")
    padded = padded.astype(jnp.bfloat16)
    t_pad = padded.shape[1]
    n_frames = 1 + (t_pad - n_fft) // hop_length
    if n_fft % hop_length == 0:
        ratio = n_fft // hop_length
        n_blocks = n_frames + ratio - 1
        blocks = padded[:, :n_blocks * hop_length].reshape(B, n_blocks,
                                                           hop_length)
        frames = jnp.concatenate(
            [blocks[:, j:j + n_frames, :] for j in range(ratio)], axis=-1)
    else:  # fallback when hop does not divide n_fft
        idx = (jnp.arange(n_frames)[:, None] * hop_length
               + jnp.arange(n_fft)[None, :])
        frames = padded[:, idx]
    frames = frames.reshape(B * n_frames, n_fft)
    # TODO(synk): the 4x frame overlap is still materialized (in bf16) in HBM;
    # a hop-block in-kernel framing would cut kernel-1 input bytes further.

    # ---- pack PACK frames per row (lane-dense matmuls and stores) -----------
    nf = B * n_frames
    n_rows = -(-nf // PACK)
    if n_rows * PACK != nf:
        frames = jnp.pad(frames, ((0, n_rows * PACK - nf), (0, 0)))
    fpack = frames.reshape(n_rows, PACK * n_fft)

    # 8-aligned row tiles (no masked sublane stores), tile_r up to 1024 while
    # keeping >= ~4 grid steps so both v7x TensorCores get work.
    n_rows8 = _round_up(n_rows, 8)
    tile_r = max(8, min(1024, _round_up(-(-n_rows8 // 4), 8)))
    rows_pad = _round_up(n_rows8, tile_r)
    if rows_pad != n_rows:
        fpack = jnp.pad(fpack, ((0, rows_pad - n_rows), (0, 0)))

    # ---- window-folded DFT basis + block-placed mel filterbank (bf16) -------
    basis = windowed_dft_basis(n_fft).astype(jnp.bfloat16)   # (n_fft, 2*nk)
    fb = melscale_fbanks(n_fft // 2 + 1, 0.0, sample_rate / 2.0, n_mels,
                         sample_rate)                         # (n_freq, n_mels)
    fb_k = fb[1:nk + 1, :]                                    # drop DC row (== 0 for f_min=0)
    fb_stack = jnp.zeros((PACK * nk, PACK * n_mels), jnp.float32)
    for j in range(PACK):
        fb_stack = fb_stack.at[j * nk:(j + 1) * nk,
                               j * n_mels:(j + 1) * n_mels].set(fb_k)
    fb_stack = fb_stack.astype(jnp.bfloat16)

    # ---- kernel 1: log-mel features, pipelined over frame tiles -------------
    k1_vmem = (2 * tile_r * PACK * n_fft * 2          # input tile, bf16, 2 bufs
               + 2 * tile_r * PACK * n_mels * 4       # output tile, f32, 2 bufs
               + 2 * (basis.size + fb_stack.size) * 2  # resident constants
               + 4 * tile_r * PACK * nk * 4)          # in-kernel f32 temporaries
    log_mel = pl.pallas_call(
        functools.partial(melspec_kernel, eps=float(eps), n_fft=n_fft),
        out_shape=jax.ShapeDtypeStruct((rows_pad, PACK * n_mels), jnp.float32),
        grid_spec=pltpu.PrefetchScalarGridSpec(
            num_scalar_prefetch=0,
            grid=(rows_pad // tile_r,),
            in_specs=[
                pl.BlockSpec((tile_r, PACK * n_fft), lambda i: (i, 0)),
                pl.BlockSpec((n_fft, 2 * nk), lambda i: (0, 0)),
                pl.BlockSpec((PACK * nk, PACK * n_mels), lambda i: (0, 0)),
            ],
            out_specs=pl.BlockSpec((tile_r, PACK * n_mels), lambda i: (i, 0)),
        ),
        compiler_params=pltpu.CompilerParams(
            dimension_semantics=("parallel",),
            vmem_limit_bytes=_vmem_limit(k1_vmem)),
    )(fpack, basis, fb_stack)

    # frame-major flatten (L1-cdist invariant vs PyTorch's mel-major flatten);
    # drop padded rows, regroup per batch element (cheap contiguous reshapes).
    n_feat = n_frames * n_mels
    feats = log_mel.reshape(-1)[:nf * n_mels].reshape(B, n_feat)

    # ---- kernel 2a: chunked pairwise L1 partial sums -------------------------
    budget = (8 * 1024 * 1024) // (4 * B * B)         # ~8 MiB live |diff| chunk
    f_chunk = max(128, min((budget // 128) * 128, 2048, _round_up(n_feat, 128)))
    n_chunks = -(-n_feat // f_chunk)
    n_split = 2 if n_chunks >= 2 else 1               # 2-way split when possible
    n_half = -(-n_chunks // n_split)
    f_pad = n_split * n_half * f_chunk
    feats_p = jnp.pad(feats, ((0, 0), (0, f_pad - n_feat)))  # zero cols: L1 no-op

    k2_vmem = (2 * B * f_chunk * 4 + 4 * B * B * 128 * 4 + 2 * n_split * B * B * 4)
    partials = pl.pallas_call(
        l1_partial_kernel,
        out_shape=jax.ShapeDtypeStruct((n_split, B, B), jnp.float32),
        grid_spec=pltpu.PrefetchScalarGridSpec(
            num_scalar_prefetch=0,
            grid=(n_split, n_half),
            in_specs=[
                pl.BlockSpec((B, f_chunk), lambda c, i: (0, c * n_half + i)),
            ],
            out_specs=pl.BlockSpec((1, B, B), lambda c, i: (c, 0, 0)),
            scratch_shapes=[pltpu.VMEM((B, B, 128), jnp.float32)],
        ),
        compiler_params=pltpu.CompilerParams(
            dimension_semantics=("parallel", "arbitrary"),
            vmem_limit_bytes=_vmem_limit(k2_vmem)),
    )(feats_p)

    # ---- kernel 2b: finalize (exact latent L2 cdist, tanh, mean) -------------
    loss = pl.pallas_call(
        functools.partial(loss_finalize_kernel, gamma=float(gamma),
                          inv_n_feat=1.0 / float(n_feat)),
        out_shape=jax.ShapeDtypeStruct((1, 1), jnp.float32),
        grid_spec=pltpu.PrefetchScalarGridSpec(
            num_scalar_prefetch=0,
            grid=(1,),
            in_specs=[
                pl.BlockSpec((n_split, B, B), lambda i: (0, 0, 0)),
                pl.BlockSpec((B, D), lambda i: (0, 0)),
            ],
            out_specs=pl.BlockSpec((1, 1), lambda i: (0, 0)),
        ),
        compiler_params=pltpu.CompilerParams(
            dimension_semantics=("arbitrary",)),
    )(partials, latent)

    return loss[0, 0]


if __name__ == "__main__":
    key = jax.random.PRNGKey(0)
    k_audio, k_latent = jax.random.split(key)

    B, T, D_latent = 4, 512, 32
    audio = jax.random.normal(k_audio, (B, T), dtype=jnp.float32)
    latent = jax.random.normal(k_latent, (B, D_latent), dtype=jnp.float32)

    loss = audio_latent_regularizer(
        audio, latent,
        eps=1.0, gamma=1.0,
        sample_rate=8000, n_fft=256, hop_length=64, n_mels=32,
    )
    jax.block_until_ready(loss)
    print("KERNEL_OK")
</pallas_src>

<mosaic_0001>
module attributes {stable_mosaic.version = 11 : i64} {
  func.func @melspec_kernel(%arg0: i32, %arg1: memref<8x1024xbf16, #tpu.memory_space<vmem>>, %arg2: memref<256x256xbf16, #tpu.memory_space<vmem>>, %arg3: memref<512x128xbf16, #tpu.memory_space<vmem>>, %arg4: memref<8x128xf32, #tpu.memory_space<vmem>>) attributes {dimension_semantics = [#tpu.dimension_semantics<parallel>], iteration_bounds = array<i64: 2>, scalar_prefetch = 0 : i64, scratch_operands = 0 : i64, tpu.core_type = #tpu.core_type<tc>, window_params = [{transform_indices = @transform_0, window_bounds = array<i64: 8, 1024>}, {pipeline_mode = #tpu.pipeline_mode<synchronous>, transform_indices = @transform_1, window_bounds = array<i64: 256, 256>}, {pipeline_mode = #tpu.pipeline_mode<synchronous>, transform_indices = @transform_2, window_bounds = array<i64: 512, 128>}, {transform_indices = @transform_3, window_bounds = array<i64: 8, 128>}]} {
    %c0 = arith.constant 0 : index
    %c0_0 = arith.constant 0 : index
    %0 = vector.load %arg1[%c0, %c0_0] : memref<8x1024xbf16, #tpu.memory_space<vmem>>, vector<8x1024xbf16>
    %c0_1 = arith.constant 0 : index
    %c0_2 = arith.constant 0 : index
    %1 = vector.load %arg2[%c0_1, %c0_2] : memref<256x256xbf16, #tpu.memory_space<vmem>>, vector<256x256xbf16>
    %2 = vector.extract_strided_slice %0 {offsets = [0, 0], sizes = [8, 256], strides = [1, 1]} : vector<8x1024xbf16> to vector<8x256xbf16>
    %cst = arith.constant dense<0.000000e+00> : vector<8x256xf32>
    %3 = tpu.matmul %2, %1, %cst {dimension_numbers = #tpu.dot_dimension_numbers<[1], [0], [0], [1], [0, 0, 1, 1], [], []>} : vector<8x256xbf16>, vector<256x256xbf16>, vector<8x256xf32> -> vector<8x256xf32>
    %4 = vector.extract_strided_slice %3 {offsets = [0, 0], sizes = [8, 128], strides = [1, 1]} : vector<8x256xf32> to vector<8x128xf32>
    %5 = vector.extract_strided_slice %3 {offsets = [0, 128], sizes = [8, 128], strides = [1, 1]} : vector<8x256xf32> to vector<8x128xf32>
    %6 = arith.mulf %4, %4 : vector<8x128xf32>
    %7 = arith.mulf %5, %5 : vector<8x128xf32>
    %8 = arith.addf %6, %7 : vector<8x128xf32>
    %9 = vector.extract_strided_slice %0 {offsets = [0, 256], sizes = [8, 256], strides = [1, 1]} : vector<8x1024xbf16> to vector<8x256xbf16>
    %cst_3 = arith.constant dense<0.000000e+00> : vector<8x256xf32>
    %10 = tpu.matmul %9, %1, %cst_3 {dimension_numbers = #tpu.dot_dimension_numbers<[1], [0], [0], [1], [0, 0, 1, 1], [], []>} : vector<8x256xbf16>, vector<256x256xbf16>, vector<8x256xf32> -> vector<8x256xf32>
    %11 = vector.extract_strided_slice %10 {offsets = [0, 0], sizes = [8, 128], strides = [1, 1]} : vector<8x256xf32> to vector<8x128xf32>
    %12 = vector.extract_strided_slice %10 {offsets = [0, 128], sizes = [8, 128], strides = [1, 1]} : vector<8x256xf32> to vector<8x128xf32>
    %13 = arith.mulf %11, %11 : vector<8x128xf32>
    %14 = arith.mulf %12, %12 : vector<8x128xf32>
    %15 = arith.addf %13, %14 : vector<8x128xf32>
    %16 = vector.extract_strided_slice %0 {offsets = [0, 512], sizes = [8, 256], strides = [1, 1]} : vector<8x1024xbf16> to vector<8x256xbf16>
    %cst_4 = arith.constant dense<0.000000e+00> : vector<8x256xf32>
    %17 = tpu.matmul %16, %1, %cst_4 {dimension_numbers = #tpu.dot_dimension_numbers<[1], [0], [0], [1], [0, 0, 1, 1], [], []>} : vector<8x256xbf16>, vector<256x256xbf16>, vector<8x256xf32> -> vector<8x256xf32>
    %18 = vector.extract_strided_slice %17 {offsets = [0, 0], sizes = [8, 128], strides = [1, 1]} : vector<8x256xf32> to vector<8x128xf32>
    %19 = vector.extract_strided_slice %17 {offsets = [0, 128], sizes = [8, 128], strides = [1, 1]} : vector<8x256xf32> to vector<8x128xf32>
    %20 = arith.mulf %18, %18 : vector<8x128xf32>
    %21 = arith.mulf %19, %19 : vector<8x128xf32>
    %22 = arith.addf %20, %21 : vector<8x128xf32>
    %23 = vector.extract_strided_slice %0 {offsets = [0, 768], sizes = [8, 256], strides = [1, 1]} : vector<8x1024xbf16> to vector<8x256xbf16>
    %cst_5 = arith.constant dense<0.000000e+00> : vector<8x256xf32>
    %24 = tpu.matmul %23, %1, %cst_5 {dimension_numbers = #tpu.dot_dimension_numbers<[1], [0], [0], [1], [0, 0, 1, 1], [], []>} : vector<8x256xbf16>, vector<256x256xbf16>, vector<8x256xf32> -> vector<8x256xf32>
    %25 = vector.extract_strided_slice %24 {offsets = [0, 0], sizes = [8, 128], strides = [1, 1]} : vector<8x256xf32> to vector<8x128xf32>
    %26 = vector.extract_strided_slice %24 {offsets = [0, 128], sizes = [8, 128], strides = [1, 1]} : vector<8x256xf32> to vector<8x128xf32>
    %27 = arith.mulf %25, %25 : vector<8x128xf32>
    %28 = arith.mulf %26, %26 : vector<8x128xf32>
    %29 = arith.addf %27, %28 : vector<8x128xf32>
    %30 = tpu.concatenate %8, %15, %22, %29 in 1 : vector<8x128xf32>, vector<8x128xf32>, vector<8x128xf32>, vector<8x128xf32> -> vector<8x512xf32>
    %31 = arith.truncf %30 : vector<8x512xf32> to vector<8x512xbf16>
    %c0_6 = arith.constant 0 : index
    %c0_7 = arith.constant 0 : index
    %32 = vector.load %arg3[%c0_6, %c0_7] : memref<512x128xbf16, #tpu.memory_space<vmem>>, vector<512x128xbf16>
    %cst_8 = arith.constant dense<0.000000e+00> : vector<8x128xf32>
    %33 = tpu.matmul %31, %32, %cst_8 {dimension_numbers = #tpu.dot_dimension_numbers<[1], [0], [0], [1], [0, 0, 1, 1], [], []>} : vector<8x512xbf16>, vector<512x128xbf16>, vector<8x128xf32> -> vector<8x128xf32>
    %cst_9 = arith.constant 1.000000e+00 : f32
    %34 = vector.broadcast %cst_9 : f32 to vector<8x128xf32>
    %35 = arith.addf %33, %34 : vector<8x128xf32>
    %36 = math.log %35 : vector<8x128xf32>
    %c0_10 = arith.constant 0 : index
    %c0_11 = arith.constant 0 : index
    %37 = vector.load %arg4[%c0_10, %c0_11] : memref<8x128xf32, #tpu.memory_space<vmem>>, vector<8x128xf32>
    tpu.vector_store %arg4[%c0_10, %c0_11], %36 {strides = array<i32>} : memref<8x128xf32, #tpu.memory_space<vmem>>, vector<8x128xf32>,
    return
  }
  func.func @transform_0(%arg0: i32) -> (i32, i32) {
    %c0_i32 = arith.constant 0 : i32
    %c0_i32_0 = arith.constant 0 : i32
    return %arg0, %c0_i32 : i32, i32
  }
  func.func @transform_1(%arg0: i32) -> (i32, i32) {
    %c0_i32 = arith.constant 0 : i32
    %c0_i32_0 = arith.constant 0 : i32
    %c0_i32_1 = arith.constant 0 : i32
    return %c0_i32, %c0_i32_0 : i32, i32
  }
  func.func @transform_2(%arg0: i32) -> (i32, i32) {
    %c0_i32 = arith.constant 0 : i32
    %c0_i32_0 = arith.constant 0 : i32
    %c0_i32_1 = arith.constant 0 : i32
    return %c0_i32, %c0_i32_0 : i32, i32
  }
  func.func @transform_3(%arg0: i32) -> (i32, i32) {
    %c0_i32 = arith.constant 0 : i32
    %c0_i32_0 = arith.constant 0 : i32
    return %arg0, %c0_i32 : i32, i32
  }
}

</mosaic_0001>

<llo_original>
// kernel: tpu_custom_call.1
$region0: #{tpu_custom_call.1}
  #allocation0 [shape = 'u32[]', space=smem, size = 0x4, offset = 0x4, fixed_abs, tag = 'smem constant byte address 0x4 - core index']
  #allocation1 [shape = 'u32[72,128]{1,0:T(1,128)}', space=vmem, size = 0x9000, scoped, tag = 'internal scratch']
  %s0 = inlined_call_operand.hbm [shape: bf16[16,1024], index: 0, kind: input, shape index: {}]
  %s1 = inlined_call_operand.hbm [shape: bf16[256,256], index: 1, kind: input, shape index: {}]
  %s2 = inlined_call_operand.hbm [shape: bf16[512,128], index: 2, kind: input, shape index: {}]
  %s3 = inlined_call_operand.hbm [shape: f32[16,128], index: 3, kind: output, shape index: {}]
  %s4 = sld [smem:[#allocation0]]
  $region57: #{tpu_custom_call.1} parent=0
    _
  %s6 = ssub.s32 1, %s4
  %s7 = scalar_select 0, %s6, %s4
  $region1: #{tpu_custom_call.1} parent=0
    #allocation2 [shape = 'u8[32768]{0}', space=vmem, size = 0x8000, scoped, tag = 'input window, operand 0']
    #allocation3 [shape = 's32[2]{0}', space=sflag, size = 0x8, scoped, tag = 'scoped memory for tpu_custom_call.1']
    #allocation4 [shape = 's32[2]{0}', space=sflag, size = 0x8, scoped, tag = 'scoped memory for tpu_custom_call.1']
    #allocation5 [shape = 'u8[131072]{0}', space=vmem, size = 0x20000, scoped, tag = 'input window, operand 1, single buffered']
    #allocation6 [shape = 's32[1]{0}', space=sflag, size = 0x4, scoped, tag = 'scoped memory for tpu_custom_call.1']
    #allocation7 [shape = 'u8[131072]{0}', space=vmem, size = 0x20000, scoped, tag = 'input window, operand 2, single buffered']
    #allocation8 [shape = 'u8[8192]{0}', space=vmem, size = 0x2000, scoped, tag = 'output window, operand 0']
    %8 = vsyncpa [#allocation3], 0
    %s9 = scalar_lea.sflag [#allocation3], 1
    %10 = vsyncpa %s9, 0
    %11 = vsyncpa [#allocation6], 0
    %12 = vsyncpa [#allocation4], 0
    %s13 = scalar_lea.sflag [#allocation4], 1
    %14 = vsyncpa %s13, 0
    loop: start=0, step=1, limit=4
    $region2: #{tpu_custom_call.1} parent=1 // loop_pre_header
      _
    $region3: #{tpu_custom_call.1} parent=1 // loop_header
      %s16 = sphi 0, %s20
      %p17 = scmp.ge.s32.totalorder %s16, 4
      %s26 = sphi 0, %s28
      %s29 = sphi 0, %s26
      %s30 = sphi 0, %s29
      %s46 = sphi 0, %s30
      %s50 = sphi 0, %s50
      %s52 = sphi 0, %s50
      %s53 = sphi 0, %s52
      %s67 = sphi 0, %s53
      %s71 = sphi 0, %s71
      %s73 = sphi 0, %s71
      %s74 = sphi 0, %s73
      %s88 = sphi 0, %s74
      %s94 = sphi 0, %s96
      %s97 = sphi 0, %s94
      %s98 = sphi 0, %s97
      %s114 = sphi 0, %s98
    $region4: #{tpu_custom_call.1} parent=1 // loop_header_branch
      %19 = sbr.rel (%p17) target = $region8
    $region5: #{tpu_custom_call.1} parent=1 // loop_body
      %s21 = ssub.s32 %s16, 1
      %s22 = ssub.s32 %s16, 2
      %s23 = sadd.s32 %s16, 1
      %s24 = ssub.s32 %s16, %s23
      %p25 = scmp.eq.s32.totalorder %s24, 0
      %s27 = sadd.s32 %s26, 1
      %s28 = scalar_select %p25, %s26, %s27
      %p31 = pneg %p25
      %p32 = scmp.eq.s32.totalorder %s16, 1
      %p33 = por %p31, %p32
      %p34 = scmp.ne.s32.totalorder %s26, %s29
      %p35 = scmp.eq.s32.totalorder %s16, 0
      %p36 = por %p34, %p35
      %p37 = scmp.ne.s32.totalorder %s26, %s29
      %p38 = scmp.eq.s32.totalorder %s21, 1
      %p39 = por %p37, %p38
      %p40 = scmp.ne.s32.totalorder %s29, %s30
      %p41 = scmp.eq.s32.totalorder %s21, 0
      %p42 = por %p40, %p41
      %p43 = scmp.ne.s32.totalorder %s29, %s30
      %p44 = scmp.eq.s32.totalorder %s22, 1
      %p45 = por %p43, %p44
      %p47 = scmp.ne.s32.totalorder %s30, %s46
      %p48 = scmp.eq.s32.totalorder %s22, 0
      %p49 = por %p47, %p48
      %s51 = sadd.s32 %s50, 1
      %p54 = scmp.eq.s32.totalorder %s16, 1
      %p55 = scmp.ne.s32.totalorder %s50, %s52
      %p56 = scmp.eq.s32.totalorder %s16, 0
      %p57 = por %p55, %p56
      %p58 = scmp.ne.s32.totalorder %s50, %s52
      %p59 = scmp.eq.s32.totalorder %s21, 1
      %p60 = por %p58, %p59
      %p61 = scmp.ne.s32.totalorder %s52, %s53
      %p62 = scmp.eq.s32.totalorder %s21, 0
      %p63 = por %p61, %p62
      %p64 = scmp.ne.s32.totalorder %s52, %s53
      %p65 = scmp.eq.s32.totalorder %s22, 1
      %p66 = por %p64, %p65
      %p68 = scmp.ne.s32.totalorder %s53, %s67
      %p69 = scmp.eq.s32.totalorder %s22, 0
      %p70 = por %p68, %p69
      %s72 = sadd.s32 %s71, 1
      %p75 = scmp.eq.s32.totalorder %s16, 1
      %p76 = scmp.ne.s32.totalorder %s71, %s73
      %p77 = scmp.eq.s32.totalorder %s16, 0
      %p78 = por %p76, %p77
      %p79 = scmp.ne.s32.totalorder %s71, %s73
      %p80 = scmp.eq.s32.totalorder %s21, 1
      %p81 = por %p79, %p80
      %p82 = scmp.ne.s32.totalorder %s73, %s74
      %p83 = scmp.eq.s32.totalorder %s21, 0
      %p84 = por %p82, %p83
      %p85 = scmp.ne.s32.totalorder %s73, %s74
      %p86 = scmp.eq.s32.totalorder %s22, 1
      %p87 = por %p85, %p86
      %p89 = scmp.ne.s32.totalorder %s74, %s88
      %p90 = scmp.eq.s32.totalorder %s22, 0
      %p91 = por %p89, %p90
      %s92 = ssub.s32 %s16, %s23
      %p93 = scmp.eq.s32.totalorder %s92, 0
      %s95 = sadd.s32 %s94, 1
      %s96 = scalar_select %p93, %s94, %s95
      %p99 = pneg %p93
      %p100 = scmp.eq.s32.totalorder %s16, 1
      %p101 = por %p99, %p100
      %p102 = scmp.ne.s32.totalorder %s94, %s97
      %p103 = scmp.eq.s32.totalorder %s16, 0
      %p104 = por %p102, %p103
      %p105 = scmp.ne.s32.totalorder %s94, %s97
      %p106 = scmp.eq.s32.totalorder %s21, 1
      %p107 = por %p105, %p106
      %p108 = scmp.ne.s32.totalorder %s97, %s98
      %p109 = scmp.eq.s32.totalorder %s21, 0
      %p110 = por %p108, %p109
      %p111 = scmp.ne.s32.totalorder %s97, %s98
      %p112 = scmp.eq.s32.totalorder %s22, 1
      %p113 = por %p111, %p112
      %p115 = scmp.ne.s32.totalorder %s98, %s114
      %p116 = scmp.eq.s32.totalorder %s22, 0
      %p117 = por %p115, %p116
      %p118 = scmp.le.s32.totalorder 1, %s16
      %p119 = scmp.lt.s32.totalorder %s16, 3
      %p120 = pnand %p118, %p119
      %p121 = pneg %p120
      // Predicated region
      $region9: #{tpu_custom_call.1} parent=5 // pred_check
        _
      $region10: #{tpu_custom_call.1} parent=5 // pred_check_branch
        %123 = sbr.rel (%p120) target = $region12
      $region11: #{tpu_custom_call.1} parent=5 // pred_region
        %s124 = ssub.s32 %s16, 1
        // Predicated region
        $region13: #{tpu_custom_call.1} parent=11 // pred_check
          %p125 = pneg %p63
        $region14: #{tpu_custom_call.1} parent=11 // pred_check_branch
          %127 = sbr.rel (%p125) target = $region16
        $region15: #{tpu_custom_call.1} parent=11 // pred_region
          %129 = vsyncadd [#allocation6], 0
          %s130 = sshll.u32 %s1, 4
          %s131 = int_to_ptr.hbm [resolvable:$true] %s130
          %s132 = sshll.u32 [#allocation5], 4
          %s133 = int_to_ptr.vmem [resolvable:$true] %s132
          %138 = dma.hbm_to_vmem [thread:$0]  %s131, 4096, %s133, [#allocation6], 128, 128, 8
        $region16: #{tpu_custom_call.1} parent=11 // pred_fallthru
          _
        // Predicated region
        $region17: #{tpu_custom_call.1} parent=11 // pred_check
          %p139 = pneg %p84
        $region18: #{tpu_custom_call.1} parent=11 // pred_check_branch
          %141 = sbr.rel (%p139) target = $region20
        $region19: #{tpu_custom_call.1} parent=11 // pred_region
          %143 = vsyncadd [#allocation6], 0
          %s144 = sshll.u32 %s2, 4
          %s145 = int_to_ptr.hbm [resolvable:$true] %s144
          %s146 = sshll.u32 [#allocation7], 4
          %s147 = int_to_ptr.vmem [resolvable:$true] %s146
          %152 = dma.hbm_to_vmem [thread:$0]  %s145, 4096, %s147, [#allocation6], 64, 64, 4
        $region20: #{tpu_custom_call.1} parent=11 // pred_fallthru
          _
      $region12: #{tpu_custom_call.1} parent=5 // pred_fallthru
        _
      %p153 = scmp.lt.s32.totalorder %s16, 2
      // Predicated region
      $region21: #{tpu_custom_call.1} parent=5 // pred_check
        %p154 = pneg %p153
      $region22: #{tpu_custom_call.1} parent=5 // pred_check_branch
        %156 = sbr.rel (%p154) target = $region24
      $region23: #{tpu_custom_call.1} parent=5 // pred_region
        // Predicated region
        $region25: #{tpu_custom_call.1} parent=23 // pred_check
          %p157 = pneg %p36
        $region26: #{tpu_custom_call.1} parent=23 // pred_check_branch
          %159 = sbr.rel (%p157) target = $region28
        $region27: #{tpu_custom_call.1} parent=23 // pred_region
          %s160 = sand.u32 %s26, 1
          %s161 = scalar_lea.sflag [#allocation3], %s160
          %s162 = sand.u32 %s26, 1
          %s163 = smul.addr %s162, 32
          %s164 = scalar_lea.vmem [#allocation2], %s163
          %166 = vsyncadd %s161, 0
          %s167 = smul.addr %s16, 8
          %s168 = smul.addr %s167, 4
          %s169 = scalar_lea.hbm %s0, %s168
          %s171 = sshll.u32 %s169, 4
          %s172 = int_to_ptr.hbm [resolvable:$true] %s171
          %s173 = sshll.u32 %s164, 4
          %s174 = int_to_ptr.vmem [resolvable:$true] %s173
          %176 = dma.hbm_to_vmem [thread:$0]  %s172, 512, %s174, %s161
        $region28: #{tpu_custom_call.1} parent=23 // pred_fallthru
          _
      $region24: #{tpu_custom_call.1} parent=5 // pred_fallthru
        _
      %p177 = scmp.le.s32.totalorder 1, %s16
      %p178 = scmp.lt.s32.totalorder %s16, 3
      %p179 = pnand %p177, %p178
      %p180 = pneg %p179
      // Predicated region
      $region29: #{tpu_custom_call.1} parent=5 // pred_check
        _
      $region30: #{tpu_custom_call.1} parent=5 // pred_check_branch
        %182 = sbr.rel (%p179) target = $region32
      $region31: #{tpu_custom_call.1} parent=5 // pred_region
        %s183 = ssub.s32 %s16, 1
        %s184 = sand.u32 %s29, 1
        %s185 = scalar_lea.sflag [#allocation3], %s184
        %s186 = sand.u32 %s29, 1
        %s187 = smul.addr %s186, 32
        %s188 = scalar_lea.vmem [#allocation2], %s187
        // Predicated region
        $region33: #{tpu_custom_call.1} parent=31 // pred_check
          %p189 = pneg %p42
        $region34: #{tpu_custom_call.1} parent=31 // pred_check_branch
          %191 = sbr.rel (%p189) target = $region36
        $region35: #{tpu_custom_call.1} parent=31 // pred_region
          %193 = dma.done %s185, 512
        $region36: #{tpu_custom_call.1} parent=31 // pred_fallthru
          _
        // Predicated region
        $region37: #{tpu_custom_call.1} parent=31 // pred_check
          %p194 = pneg %p63
        $region38: #{tpu_custom_call.1} parent=31 // pred_check_branch
          %196 = sbr.rel (%p194) target = $region40
        $region39: #{tpu_custom_call.1} parent=31 // pred_region
          %198 = dma.done [#allocation6], 4096
        $region40: #{tpu_custom_call.1} parent=31 // pred_fallthru
          _
        // Predicated region
        $region41: #{tpu_custom_call.1} parent=31 // pred_check
          %p199 = pneg %p84
        $region42: #{tpu_custom_call.1} parent=31 // pred_check_branch
          %201 = sbr.rel (%p199) target = $region44
        $region43: #{tpu_custom_call.1} parent=31 // pred_region
          %203 = dma.done [#allocation6], 4096
        $region44: #{tpu_custom_call.1} parent=31 // pred_fallthru
          _
        %s204 = sand.u32 %s29, 1
        %s205 = scalar_lea.sflag [#allocation3], %s204
        %s206 = sand.u32 %s29, 1
        %s207 = smul.addr %s206, 32
        %s208 = scalar_lea.vmem [#allocation2], %s207
        %p209 = pneg %p42
        %p210 = pneg %p39
        %p211 = pneg %p63
        %p212 = pneg %p60
        %p213 = pneg %p84
        %p214 = pneg %p81
        %p215 = pneg %p110
        %p216 = pneg %p107
        %s217 = sand.u32 %s97, 1
        %s218 = scalar_lea.sflag [#allocation4], %s217
        %s219 = sand.u32 %s97, 1
        %s220 = smul.addr %s219, 8
        %s221 = scalar_lea.vmem [#allocation8], %s220
        %v222 = vld [vmem:[%s188] sm:$0xff]
        %v223 = vld [vmem:[%s188 + $0x8] sm:$0xff]
        %v224 = vld [vmem:[%s188 + $0x10] sm:$0xff]
        %v225 = vld [vmem:[%s188 + $0x18] sm:$0xff]
        %v226 = vld [vmem:[#allocation5] sm:$0xff]
        %v227 = vld [vmem:[#allocation5 + $0x8] sm:$0xff]
        %v228 = vld [vmem:[#allocation5 + $0x10] sm:$0xff]
        %v229 = vld [vmem:[#allocation5 + $0x18] sm:$0xff]
        %v230 = vld [vmem:[#allocation5 + $0x20] sm:$0xff]
        %v231 = vld [vmem:[#allocation5 + $0x28] sm:$0xff]
        %v232 = vld [vmem:[#allocation5 + $0x30] sm:$0xff]
        %v233 = vld [vmem:[#allocation5 + $0x38] sm:$0xff]
        %v234 = vld [vmem:[#allocation5 + $0x40] sm:$0xff]
        %v235 = vld [vmem:[#allocation5 + $0x48] sm:$0xff]
        %v236 = vld [vmem:[#allocation5 + $0x50] sm:$0xff]
        %v237 = vld [vmem:[#allocation5 + $0x58] sm:$0xff]
        %v238 = vld [vmem:[#allocation5 + $0x60] sm:$0xff]
        %v239 = vld [vmem:[#allocation5 + $0x68] sm:$0xff]
        %v240 = vld [vmem:[#allocation5 + $0x70] sm:$0xff]
        %v241 = vld [vmem:[#allocation5 + $0x78] sm:$0xff]
        %v242 = vld [vmem:[#allocation5 + $0x80] sm:$0xff]
        %v243 = vld [vmem:[#allocation5 + $0x88] sm:$0xff]
        %v244 = vld [vmem:[#allocation5 + $0x90] sm:$0xff]
        %v245 = vld [vmem:[#allocation5 + $0x98] sm:$0xff]
        %v246 = vld [vmem:[#allocation5 + $0xa0] sm:$0xff]
        %v247 = vld [vmem:[#allocation5 + $0xa8] sm:$0xff]
        %v248 = vld [vmem:[#allocation5 + $0xb0] sm:$0xff]
        %v249 = vld [vmem:[#allocation5 + $0xb8] sm:$0xff]
        %v250 = vld [vmem:[#allocation5 + $0xc0] sm:$0xff]
        %v251 = vld [vmem:[#allocation5 + $0xc8] sm:$0xff]
        %v252 = vld [vmem:[#allocation5 + $0xd0] sm:$0xff]
        %v253 = vld [vmem:[#allocation5 + $0xd8] sm:$0xff]
        %v254 = vld [vmem:[#allocation5 + $0xe0] sm:$0xff]
        %v255 = vld [vmem:[#allocation5 + $0xe8] sm:$0xff]
        %v256 = vld [vmem:[#allocation5 + $0xf0] sm:$0xff]
        %v257 = vld [vmem:[#allocation5 + $0xf8] sm:$0xff]
        %v259 = vunpack.c.l.b16 %v222
        %v260 = vunpack.c.h.b16 %v222
        %v261 = vpack.c.b16 %v259, %v259
        %v262 = vpack.c.b16 %v260, %v260
        %v297 = vunpack.c.l.b16 %v226
        %v298 = vunpack.c.h.b16 %v226
        %v299 = vunpack.c.l.b16 %v227
        %v300 = vunpack.c.h.b16 %v227
        %v301 = vunpack.c.l.b16 %v228
        %v302 = vunpack.c.h.b16 %v228
        %v303 = vunpack.c.l.b16 %v229
        %v304 = vunpack.c.h.b16 %v229
        %v305 = vunpack.c.l.b16 %v230
        %v306 = vunpack.c.h.b16 %v230
        %v307 = vunpack.c.l.b16 %v231
        %v308 = vunpack.c.h.b16 %v231
        %v309 = vunpack.c.l.b16 %v232
        %v310 = vunpack.c.h.b16 %v232
        %v311 = vunpack.c.l.b16 %v233
        %v312 = vunpack.c.h.b16 %v233
        %v313 = vunpack.c.l.b16 %v234
        %v314 = vunpack.c.h.b16 %v234
        %v315 = vunpack.c.l.b16 %v235
        %v316 = vunpack.c.h.b16 %v235
        %v317 = vunpack.c.l.b16 %v236
        %v318 = vunpack.c.h.b16 %v236
        %v319 = vunpack.c.l.b16 %v237
        %v320 = vunpack.c.h.b16 %v237
        %v321 = vunpack.c.l.b16 %v238
        %v322 = vunpack.c.h.b16 %v238
        %v323 = vunpack.c.l.b16 %v239
        %v324 = vunpack.c.h.b16 %v239
        %v325 = vunpack.c.l.b16 %v240
        %v326 = vunpack.c.h.b16 %v240
        %v327 = vunpack.c.l.b16 %v241
        %v328 = vunpack.c.h.b16 %v241
        %v329 = vunpack.c.l.b16 %v242
        %v330 = vunpack.c.h.b16 %v242
        %v331 = vunpack.c.l.b16 %v243
        %v332 = vunpack.c.h.b16 %v243
        %v333 = vunpack.c.l.b16 %v244
        %v334 = vunpack.c.h.b16 %v244
        %v335 = vunpack.c.l.b16 %v245
        %v336 = vunpack.c.h.b16 %v245
        %v337 = vunpack.c.l.b16 %v246
        %v338 = vunpack.c.h.b16 %v246
        %v339 = vunpack.c.l.b16 %v247
        %v340 = vunpack.c.h.b16 %v247
        %v341 = vunpack.c.l.b16 %v248
        %v342 = vunpack.c.h.b16 %v248
        %v343 = vunpack.c.l.b16 %v249
        %v344 = vunpack.c.h.b16 %v249
        %v345 = vunpack.c.l.b16 %v250
        %v346 = vunpack.c.h.b16 %v250
        %v347 = vunpack.c.l.b16 %v251
        %v348 = vunpack.c.h.b16 %v251
        %v349 = vunpack.c.l.b16 %v252
        %v350 = vunpack.c.h.b16 %v252
        %v351 = vunpack.c.l.b16 %v253
        %v352 = vunpack.c.h.b16 %v253
        %v353 = vunpack.c.l.b16 %v254
        %v354 = vunpack.c.h.b16 %v254
        %v355 = vunpack.c.l.b16 %v255
        %v356 = vunpack.c.h.b16 %v255
        %v357 = vunpack.c.l.b16 %v256
        %v358 = vunpack.c.h.b16 %v256
        %v359 = vunpack.c.l.b16 %v257
        %v360 = vunpack.c.h.b16 %v257
        %v361 = vpack.c.b16 %v299, %v297
        %v362 = vpack.c.b16 %v300, %v298
        %v363 = vpack.c.b16 %v303, %v301
        %v364 = vpack.c.b16 %v304, %v302
        %v365 = vpack.c.b16 %v307, %v305
        %v366 = vpack.c.b16 %v308, %v306
        %v367 = vpack.c.b16 %v311, %v309
        %v368 = vpack.c.b16 %v312, %v310
        %v369 = vpack.c.b16 %v315, %v313
        %v370 = vpack.c.b16 %v316, %v314
        %v371 = vpack.c.b16 %v319, %v317
        %v372 = vpack.c.b16 %v320, %v318
        %v373 = vpack.c.b16 %v323, %v321
        %v374 = vpack.c.b16 %v324, %v322
        %v375 = vpack.c.b16 %v327, %v325
        %v376 = vpack.c.b16 %v328, %v326
        %v377 = vpack.c.b16 %v331, %v329
        %v378 = vpack.c.b16 %v332, %v330
        %v379 = vpack.c.b16 %v335, %v333
        %v380 = vpack.c.b16 %v336, %v334
        %v381 = vpack.c.b16 %v339, %v337
        %v382 = vpack.c.b16 %v340, %v338
        %v383 = vpack.c.b16 %v343, %v341
        %v384 = vpack.c.b16 %v344, %v342
        %v385 = vpack.c.b16 %v347, %v345
        %v386 = vpack.c.b16 %v348, %v346
        %v387 = vpack.c.b16 %v351, %v349
        %v388 = vpack.c.b16 %v352, %v350
        %v389 = vpack.c.b16 %v355, %v353
        %v390 = vpack.c.b16 %v356, %v354
        %v391 = vpack.c.b16 %v359, %v357
        %v392 = vpack.c.b16 %v360, %v358
        %425 = vmatpush.bf16.msra.mxu0 %v375
        %426 = vmatpush.bf16.msra.mxu0 %v373
        %427 = vmatpush.bf16.msra.mxu0 %v371
        %428 = vmatpush.bf16.msra.mxu0 %v369
        %429 = vmatpush.bf16.msra.mxu0 %v367
        %430 = vmatpush.bf16.msra.mxu0 %v365
        %431 = vmatpush.bf16.msra.mxu0 %v363
        %432 = vmatpush.bf16.msra.mxu0 %v361
        %433 = vmatmul.bf16.gmra.mxu0 %v261
        %v434 = vpop.f32.mrf.mxu0
        %v435 = vadd.f32 0.0, %v434
        %v436 = vpop.f32.mrf.mxu0
        %437 = vdwg.mxu0
        %438 = vmatpush.bf16.msra.mxu0 %v391
        %439 = vmatpush.bf16.msra.mxu0 %v389
        %440 = vmatpush.bf16.msra.mxu0 %v387
        %441 = vmatpush.bf16.msra.mxu0 %v385
        %442 = vmatpush.bf16.msra.mxu0 %v383
        %443 = vmatpush.bf16.msra.mxu0 %v381
        %444 = vmatpush.bf16.msra.mxu0 %v379
        %445 = vmatpush.bf16.msra.mxu0 %v377
        %446 = vmatmul.bf16.gmra.mxu0 %v262
        %v447 = vpop.f32.mrf.mxu0
        %v448 = vadd.f32 %v435, %v447
        %v449 = vpop.f32.mrf.mxu0
        %450 = vdwg.mxu0
        %451 = vmatpush.bf16.msra.mxu0 %v376
        %452 = vmatpush.bf16.msra.mxu0 %v374
        %453 = vmatpush.bf16.msra.mxu0 %v372
        %454 = vmatpush.bf16.msra.mxu0 %v370
        %455 = vmatpush.bf16.msra.mxu0 %v368
        %456 = vmatpush.bf16.msra.mxu0 %v366
        %457 = vmatpush.bf16.msra.mxu0 %v364
        %458 = vmatpush.bf16.msra.mxu0 %v362
        %459 = vmatmul.bf16.gmra.mxu0 %v261
        %v460 = vpop.f32.mrf.mxu0
        %v461 = vadd.f32 0.0, %v460
        %v462 = vpop.f32.mrf.mxu0
        %463 = vdwg.mxu0
        %464 = vmatpush.bf16.msra.mxu0 %v392
        %465 = vmatpush.bf16.msra.mxu0 %v390
        %466 = vmatpush.bf16.msra.mxu0 %v388
        %467 = vmatpush.bf16.msra.mxu0 %v386
        %468 = vmatpush.bf16.msra.mxu0 %v384
        %469 = vmatpush.bf16.msra.mxu0 %v382
        %470 = vmatpush.bf16.msra.mxu0 %v380
        %471 = vmatpush.bf16.msra.mxu0 %v378
        %472 = vmatmul.bf16.gmra.mxu0 %v262
        %v473 = vpop.f32.mrf.mxu0
        %v474 = vadd.f32 %v461, %v473
        %v475 = vpop.f32.mrf.mxu0
        %476 = vdwg.mxu0
        %v477 = vmul.f32 %v448, %v448
        %v478 = vmul.f32 %v474, %v474
        %v479 = vadd.f32 %v477, %v478
        %v481 = vunpack.c.l.b16 %v223
        %v482 = vunpack.c.h.b16 %v223
        %v483 = vpack.c.b16 %v481, %v481
        %v484 = vpack.c.b16 %v482, %v482
        %487 = vmatpush.bf16.msra.mxu0 %v375
        %488 = vmatpush.bf16.msra.mxu0 %v373
        %489 = vmatpush.bf16.msra.mxu0 %v371
        %490 = vmatpush.bf16.msra.mxu0 %v369
        %491 = vmatpush.bf16.msra.mxu0 %v367
        %492 = vmatpush.bf16.msra.mxu0 %v365
        %493 = vmatpush.bf16.msra.mxu0 %v363
        %494 = vmatpush.bf16.msra.mxu0 %v361
        %495 = vmatmul.bf16.gmra.mxu0 %v483
        %v496 = vpop.f32.mrf.mxu0
        %v497 = vadd.f32 0.0, %v496
        %v498 = vpop.f32.mrf.mxu0
        %499 = vdwg.mxu0
        %500 = vmatpush.bf16.msra.mxu0 %v391
        %501 = vmatpush.bf16.msra.mxu0 %v389
        %502 = vmatpush.bf16.msra.mxu0 %v387
        %503 = vmatpush.bf16.msra.mxu0 %v385
        %504 = vmatpush.bf16.msra.mxu0 %v383
        %505 = vmatpush.bf16.msra.mxu0 %v381
        %506 = vmatpush.bf16.msra.mxu0 %v379
        %507 = vmatpush.bf16.msra.mxu0 %v377
        %508 = vmatmul.bf16.gmra.mxu0 %v484
        %v509 = vpop.f32.mrf.mxu0
        %v510 = vadd.f32 %v497, %v509
        %v511 = vpop.f32.mrf.mxu0
        %512 = vdwg.mxu0
        %513 = vmatpush.bf16.msra.mxu0 %v376
        %514 = vmatpush.bf16.msra.mxu0 %v374
        %515 = vmatpush.bf16.msra.mxu0 %v372
        %516 = vmatpush.bf16.msra.mxu0 %v370
        %517 = vmatpush.bf16.msra.mxu0 %v368
        %518 = vmatpush.bf16.msra.mxu0 %v366
        %519 = vmatpush.bf16.msra.mxu0 %v364
        %520 = vmatpush.bf16.msra.mxu0 %v362
        %521 = vmatmul.bf16.gmra.mxu0 %v483
        %v522 = vpop.f32.mrf.mxu0
        %v523 = vadd.f32 0.0, %v522
        %v524 = vpop.f32.mrf.mxu0
        %525 = vdwg.mxu0
        %526 = vmatpush.bf16.msra.mxu0 %v392
        %527 = vmatpush.bf16.msra.mxu0 %v390
        %528 = vmatpush.bf16.msra.mxu0 %v388
        %529 = vmatpush.bf16.msra.mxu0 %v386
        %530 = vmatpush.bf16.msra.mxu0 %v384
        %531 = vmatpush.bf16.msra.mxu0 %v382
        %532 = vmatpush.bf16.msra.mxu0 %v380
        %533 = vmatpush.bf16.msra.mxu0 %v378
        %534 = vmatmul.bf16.gmra.mxu0 %v484
        %v535 = vpop.f32.mrf.mxu0
        %v536 = vadd.f32 %v523, %v535
        %v537 = vpop.f32.mrf.mxu0
        %538 = vdwg.mxu0
        %v539 = vmul.f32 %v510, %v510
        %v540 = vmul.f32 %v536, %v536
        %v541 = vadd.f32 %v539, %v540
        %v543 = vunpack.c.l.b16 %v224
        %v544 = vunpack.c.h.b16 %v224
        %v545 = vpack.c.b16 %v543, %v543
        %v546 = vpack.c.b16 %v544, %v544
        %549 = vmatpush.bf16.msra.mxu0 %v375
        %550 = vmatpush.bf16.msra.mxu0 %v373
        %551 = vmatpush.bf16.msra.mxu0 %v371
        %552 = vmatpush.bf16.msra.mxu0 %v369
        %553 = vmatpush.bf16.msra.mxu0 %v367
        %554 = vmatpush.bf16.msra.mxu0 %v365
        %555 = vmatpush.bf16.msra.mxu0 %v363
        %556 = vmatpush.bf16.msra.mxu0 %v361
        %557 = vmatmul.bf16.gmra.mxu0 %v545
        %v558 = vpop.f32.mrf.mxu0
        %v559 = vadd.f32 0.0, %v558
        %v560 = vpop.f32.mrf.mxu0
        %561 = vdwg.mxu0
        %562 = vmatpush.bf16.msra.mxu0 %v391
        %563 = vmatpush.bf16.msra.mxu0 %v389
        %564 = vmatpush.bf16.msra.mxu0 %v387
        %565 = vmatpush.bf16.msra.mxu0 %v385
        %566 = vmatpush.bf16.msra.mxu0 %v383
        %567 = vmatpush.bf16.msra.mxu0 %v381
        %568 = vmatpush.bf16.msra.mxu0 %v379
        %569 = vmatpush.bf16.msra.mxu0 %v377
        %570 = vmatmul.bf16.gmra.mxu0 %v546
        %v571 = vpop.f32.mrf.mxu0
        %v572 = vadd.f32 %v559, %v571
        %v573 = vpop.f32.mrf.mxu0
        %574 = vdwg.mxu0
        %575 = vmatpush.bf16.msra.mxu0 %v376
        %576 = vmatpush.bf16.msra.mxu0 %v374
        %577 = vmatpush.bf16.msra.mxu0 %v372
        %578 = vmatpush.bf16.msra.mxu0 %v370
        %579 = vmatpush.bf16.msra.mxu0 %v368
        %580 = vmatpush.bf16.msra.mxu0 %v366
        %581 = vmatpush.bf16.msra.mxu0 %v364
        %582 = vmatpush.bf16.msra.mxu0 %v362
        %583 = vmatmul.bf16.gmra.mxu0 %v545
        %v584 = vpop.f32.mrf.mxu0
        %v585 = vadd.f32 0.0, %v584
        %v586 = vpop.f32.mrf.mxu0
        %587 = vdwg.mxu0
        %588 = vmatpush.bf16.msra.mxu0 %v392
        %589 = vmatpush.bf16.msra.mxu0 %v390
        %590 = vmatpush.bf16.msra.mxu0 %v388
        %591 = vmatpush.bf16.msra.mxu0 %v386
        %592 = vmatpush.bf16.msra.mxu0 %v384
        %593 = vmatpush.bf16.msra.mxu0 %v382
        %594 = vmatpush.bf16.msra.mxu0 %v380
        %595 = vmatpush.bf16.msra.mxu0 %v378
        %596 = vmatmul.bf16.gmra.mxu0 %v546
        %v597 = vpop.f32.mrf.mxu0
        %v598 = vadd.f32 %v585, %v597
        %v599 = vpop.f32.mrf.mxu0
        %600 = vdwg.mxu0
        %v601 = vmul.f32 %v572, %v572
        %v602 = vmul.f32 %v598, %v598
        %v603 = vadd.f32 %v601, %v602
        %v605 = vunpack.c.l.b16 %v225
        %v606 = vunpack.c.h.b16 %v225
        %v607 = vpack.c.b16 %v605, %v605
        %v608 = vpack.c.b16 %v606, %v606
        %611 = vmatpush.bf16.msra.mxu0 %v375
        %612 = vmatpush.bf16.msra.mxu0 %v373
        %613 = vmatpush.bf16.msra.mxu0 %v371
        %614 = vmatpush.bf16.msra.mxu0 %v369
        %615 = vmatpush.bf16.msra.mxu0 %v367
        %616 = vmatpush.bf16.msra.mxu0 %v365
        %617 = vmatpush.bf16.msra.mxu0 %v363
        %618 = vmatpush.bf16.msra.mxu0 %v361
        %619 = vmatmul.bf16.gmra.mxu0 %v607
        %v620 = vpop.f32.mrf.mxu0
        %v621 = vadd.f32 0.0, %v620
        %v622 = vpop.f32.mrf.mxu0
        %623 = vdwg.mxu0
        %624 = vmatpush.bf16.msra.mxu0 %v391
        %625 = vmatpush.bf16.msra.mxu0 %v389
        %626 = vmatpush.bf16.msra.mxu0 %v387
        %627 = vmatpush.bf16.msra.mxu0 %v385
        %628 = vmatpush.bf16.msra.mxu0 %v383
        %629 = vmatpush.bf16.msra.mxu0 %v381
        %630 = vmatpush.bf16.msra.mxu0 %v379
        %631 = vmatpush.bf16.msra.mxu0 %v377
        %632 = vmatmul.bf16.gmra.mxu0 %v608
        %v633 = vpop.f32.mrf.mxu0
        %v634 = vadd.f32 %v621, %v633
        %v635 = vpop.f32.mrf.mxu0
        %636 = vdwg.mxu0
        %637 = vmatpush.bf16.msra.mxu0 %v376
        %638 = vmatpush.bf16.msra.mxu0 %v374
        %639 = vmatpush.bf16.msra.mxu0 %v372
        %640 = vmatpush.bf16.msra.mxu0 %v370
        %641 = vmatpush.bf16.msra.mxu0 %v368
        %642 = vmatpush.bf16.msra.mxu0 %v366
        %643 = vmatpush.bf16.msra.mxu0 %v364
        %644 = vmatpush.bf16.msra.mxu0 %v362
        %645 = vmatmul.bf16.gmra.mxu0 %v607
        %v646 = vpop.f32.mrf.mxu0
        %v647 = vadd.f32 0.0, %v646
        %v648 = vpop.f32.mrf.mxu0
        %649 = vdwg.mxu0
        %650 = vmatpush.bf16.msra.mxu0 %v392
        %651 = vmatpush.bf16.msra.mxu0 %v390
        %652 = vmatpush.bf16.msra.mxu0 %v388
        %653 = vmatpush.bf16.msra.mxu0 %v386
        %654 = vmatpush.bf16.msra.mxu0 %v384
        %655 = vmatpush.bf16.msra.mxu0 %v382
        %656 = vmatpush.bf16.msra.mxu0 %v380
        %657 = vmatpush.bf16.msra.mxu0 %v378
        %658 = vmatmul.bf16.gmra.mxu0 %v608
        %v659 = vpop.f32.mrf.mxu0
        %v660 = vadd.f32 %v647, %v659
        %v661 = vpop.f32.mrf.mxu0
        %662 = vdwg.mxu0
        %v663 = vmul.f32 %v634, %v634
        %v664 = vmul.f32 %v660, %v660
        %v665 = vadd.f32 %v663, %v664
        %v666 = vpack.c.bf16 %v479, %v479
        %v667 = vpack.c.bf16 %v541, %v541
        %v668 = vpack.c.bf16 %v603, %v603
        %v669 = vpack.c.bf16 %v665, %v665
        %v670 = vld [vmem:[#allocation7] sm:$0xf]
        %v671 = vld [vmem:[#allocation7 + $0x4] sm:$0xf]
        %v672 = vld [vmem:[#allocation7 + $0x8] sm:$0xf]
        %v673 = vld [vmem:[#allocation7 + $0xc] sm:$0xf]
        %v674 = vld [vmem:[#allocation7 + $0x10] sm:$0xf]
        %v675 = vld [vmem:[#allocation7 + $0x14] sm:$0xf]
        %v676 = vld [vmem:[#allocation7 + $0x18] sm:$0xf]
        %v677 = vld [vmem:[#allocation7 + $0x1c] sm:$0xf]
        %v678 = vld [vmem:[#allocation7 + $0x20] sm:$0xf]
        %v679 = vld [vmem:[#allocation7 + $0x24] sm:$0xf]
        %v680 = vld [vmem:[#allocation7 + $0x28] sm:$0xf]
        %v681 = vld [vmem:[#allocation7 + $0x2c] sm:$0xf]
        %v682 = vld [vmem:[#allocation7 + $0x30] sm:$0xf]
        %v683 = vld [vmem:[#allocation7 + $0x34] sm:$0xf]
        %v684 = vld [vmem:[#allocation7 + $0x38] sm:$0xf]
        %v685 = vld [vmem:[#allocation7 + $0x3c] sm:$0xf]
        %v686 = vld [vmem:[#allocation7 + $0x40] sm:$0xf]
        %v687 = vld [vmem:[#allocation7 + $0x44] sm:$0xf]
        %v688 = vld [vmem:[#allocation7 + $0x48] sm:$0xf]
        %v689 = vld [vmem:[#allocation7 + $0x4c] sm:$0xf]
        %v690 = vld [vmem:[#allocation7 + $0x50] sm:$0xf]
        %v691 = vld [vmem:[#allocation7 + $0x54] sm:$0xf]
        %v692 = vld [vmem:[#allocation7 + $0x58] sm:$0xf]
        %v693 = vld [vmem:[#allocation7 + $0x5c] sm:$0xf]
        %v694 = vld [vmem:[#allocation7 + $0x60] sm:$0xf]
        %v695 = vld [vmem:[#allocation7 + $0x64] sm:$0xf]
        %v696 = vld [vmem:[#allocation7 + $0x68] sm:$0xf]
        %v697 = vld [vmem:[#allocation7 + $0x6c] sm:$0xf]
        %v698 = vld [vmem:[#allocation7 + $0x70] sm:$0xf]
        %v699 = vld [vmem:[#allocation7 + $0x74] sm:$0xf]
        %v700 = vld [vmem:[#allocation7 + $0x78] sm:$0xf]
        %v701 = vld [vmem:[#allocation7 + $0x7c] sm:$0xf]
        %v702 = vld [vmem:[#allocation7 + $0x80] sm:$0xf]
        %v703 = vld [vmem:[#allocation7 + $0x84] sm:$0xf]
        %v704 = vld [vmem:[#allocation7 + $0x88] sm:$0xf]
        %v705 = vld [vmem:[#allocation7 + $0x8c] sm:$0xf]
        %v706 = vld [vmem:[#allocation7 + $0x90] sm:$0xf]
        %v707 = vld [vmem:[#allocation7 + $0x94] sm:$0xf]
        %v708 = vld [vmem:[#allocation7 + $0x98] sm:$0xf]
        %v709 = vld [vmem:[#allocation7 + $0x9c] sm:$0xf]
        %v710 = vld [vmem:[#allocation7 + $0xa0] sm:$0xf]
        %v711 = vld [vmem:[#allocation7 + $0xa4] sm:$0xf]
        %v712 = vld [vmem:[#allocation7 + $0xa8] sm:$0xf]
        %v713 = vld [vmem:[#allocation7 + $0xac] sm:$0xf]
        %v714 = vld [vmem:[#allocation7 + $0xb0] sm:$0xf]
        %v715 = vld [vmem:[#allocation7 + $0xb4] sm:$0xf]
        %v716 = vld [vmem:[#allocation7 + $0xb8] sm:$0xf]
        %v717 = vld [vmem:[#allocation7 + $0xbc] sm:$0xf]
        %v718 = vld [vmem:[#allocation7 + $0xc0] sm:$0xf]
        %v719 = vld [vmem:[#allocation7 + $0xc4] sm:$0xf]
        %v720 = vld [vmem:[#allocation7 + $0xc8] sm:$0xf]
        %v721 = vld [vmem:[#allocation7 + $0xcc] sm:$0xf]
        %v722 = vld [vmem:[#allocation7 + $0xd0] sm:$0xf]
        %v723 = vld [vmem:[#allocation7 + $0xd4] sm:$0xf]
        %v724 = vld [vmem:[#allocation7 + $0xd8] sm:$0xf]
        %v725 = vld [vmem:[#allocation7 + $0xdc] sm:$0xf]
        %v726 = vld [vmem:[#allocation7 + $0xe0] sm:$0xf]
        %v727 = vld [vmem:[#allocation7 + $0xe4] sm:$0xf]
        %v728 = vld [vmem:[#allocation7 + $0xe8] sm:$0xf]
        %v729 = vld [vmem:[#allocation7 + $0xec] sm:$0xf]
        %v730 = vld [vmem:[#allocation7 + $0xf0] sm:$0xf]
        %v731 = vld [vmem:[#allocation7 + $0xf4] sm:$0xf]
        %v732 = vld [vmem:[#allocation7 + $0xf8] sm:$0xf]
        %v733 = vld [vmem:[#allocation7 + $0xfc] sm:$0xf]
        %v798 = vunpack.c.l.b16 %v670
        %v799 = vunpack.c.l.b16 %v671
        %v800 = vunpack.c.l.b16 %v672
        %v801 = vunpack.c.l.b16 %v673
        %v802 = vunpack.c.l.b16 %v674
        %v803 = vunpack.c.l.b16 %v675
        %v804 = vunpack.c.l.b16 %v676
        %v805 = vunpack.c.l.b16 %v677
        %v806 = vunpack.c.l.b16 %v678
        %v807 = vunpack.c.l.b16 %v679
        %v808 = vunpack.c.l.b16 %v680
        %v809 = vunpack.c.l.b16 %v681
        %v810 = vunpack.c.l.b16 %v682
        %v811 = vunpack.c.l.b16 %v683
        %v812 = vunpack.c.l.b16 %v684
        %v813 = vunpack.c.l.b16 %v685
        %v814 = vunpack.c.l.b16 %v686
        %v815 = vunpack.c.l.b16 %v687
        %v816 = vunpack.c.l.b16 %v688
        %v817 = vunpack.c.l.b16 %v689
        %v818 = vunpack.c.l.b16 %v690
        %v819 = vunpack.c.l.b16 %v691
        %v820 = vunpack.c.l.b16 %v692
        %v821 = vunpack.c.l.b16 %v693
        %v822 = vunpack.c.l.b16 %v694
        %v823 = vunpack.c.l.b16 %v695
        %v824 = vunpack.c.l.b16 %v696
        %v825 = vunpack.c.l.b16 %v697
        %v826 = vunpack.c.l.b16 %v698
        %v827 = vunpack.c.l.b16 %v699
        %v828 = vunpack.c.l.b16 %v700
        %v829 = vunpack.c.l.b16 %v701
        %v830 = vunpack.c.l.b16 %v702
        %v831 = vunpack.c.l.b16 %v703
        %v832 = vunpack.c.l.b16 %v704
        %v833 = vunpack.c.l.b16 %v705
        %v834 = vunpack.c.l.b16 %v706
        %v835 = vunpack.c.l.b16 %v707
        %v836 = vunpack.c.l.b16 %v708
        %v837 = vunpack.c.l.b16 %v709
        %v838 = vunpack.c.l.b16 %v710
        %v839 = vunpack.c.l.b16 %v711
        %v840 = vunpack.c.l.b16 %v712
        %v841 = vunpack.c.l.b16 %v713
        %v842 = vunpack.c.l.b16 %v714
        %v843 = vunpack.c.l.b16 %v715
        %v844 = vunpack.c.l.b16 %v716
        %v845 = vunpack.c.l.b16 %v717
        %v846 = vunpack.c.l.b16 %v718
        %v847 = vunpack.c.l.b16 %v719
        %v848 = vunpack.c.l.b16 %v720
        %v849 = vunpack.c.l.b16 %v721
        %v850 = vunpack.c.l.b16 %v722
        %v851 = vunpack.c.l.b16 %v723
        %v852 = vunpack.c.l.b16 %v724
        %v853 = vunpack.c.l.b16 %v725
        %v854 = vunpack.c.l.b16 %v726
        %v855 = vunpack.c.l.b16 %v727
        %v856 = vunpack.c.l.b16 %v728
        %v857 = vunpack.c.l.b16 %v729
        %v858 = vunpack.c.l.b16 %v730
        %v859 = vunpack.c.l.b16 %v731
        %v860 = vunpack.c.l.b16 %v732
        %v861 = vunpack.c.l.b16 %v733
        %v862 = vpack.c.b16 %v799, %v798
        %v863 = vpack.c.b16 %v801, %v800
        %v864 = vpack.c.b16 %v803, %v802
        %v865 = vpack.c.b16 %v805, %v804
        %v866 = vpack.c.b16 %v807, %v806
        %v867 = vpack.c.b16 %v809, %v808
        %v868 = vpack.c.b16 %v811, %v810
        %v869 = vpack.c.b16 %v813, %v812
        %v870 = vpack.c.b16 %v815, %v814
        %v871 = vpack.c.b16 %v817, %v816
        %v872 = vpack.c.b16 %v819, %v818
        %v873 = vpack.c.b16 %v821, %v820
        %v874 = vpack.c.b16 %v823, %v822
        %v875 = vpack.c.b16 %v825, %v824
        %v876 = vpack.c.b16 %v827, %v826
        %v877 = vpack.c.b16 %v829, %v828
        %v878 = vpack.c.b16 %v831, %v830
        %v879 = vpack.c.b16 %v833, %v832
        %v880 = vpack.c.b16 %v835, %v834
        %v881 = vpack.c.b16 %v837, %v836
        %v882 = vpack.c.b16 %v839, %v838
        %v883 = vpack.c.b16 %v841, %v840
        %v884 = vpack.c.b16 %v843, %v842
        %v885 = vpack.c.b16 %v845, %v844
        %v886 = vpack.c.b16 %v847, %v846
        %v887 = vpack.c.b16 %v849, %v848
        %v888 = vpack.c.b16 %v851, %v850
        %v889 = vpack.c.b16 %v853, %v852
        %v890 = vpack.c.b16 %v855, %v854
        %v891 = vpack.c.b16 %v857, %v856
        %v892 = vpack.c.b16 %v859, %v858
        %v893 = vpack.c.b16 %v861, %v860
        %926 = vmatpush.bf16.msra.mxu0 %v869
        %927 = vmatpush.bf16.msra.mxu0 %v868
        %928 = vmatpush.bf16.msra.mxu0 %v867
        %929 = vmatpush.bf16.msra.mxu0 %v866
        %930 = vmatpush.bf16.msra.mxu0 %v865
        %931 = vmatpush.bf16.msra.mxu0 %v864
        %932 = vmatpush.bf16.msra.mxu0 %v863
        %933 = vmatpush.bf16.msra.mxu0 %v862
        %934 = vmatmul.bf16.gmra.mxu0 %v666
        %v935 = vpop.f32.mrf.mxu0
        %v936 = vadd.f32 1.0, %v935
        %v937 = vpop.f32.mrf.mxu0
        %938 = vdwg.mxu0
        %939 = vmatpush.bf16.msra.mxu0 %v877
        %940 = vmatpush.bf16.msra.mxu0 %v876
        %941 = vmatpush.bf16.msra.mxu0 %v875
        %942 = vmatpush.bf16.msra.mxu0 %v874
        %943 = vmatpush.bf16.msra.mxu0 %v873
        %944 = vmatpush.bf16.msra.mxu0 %v872
        %945 = vmatpush.bf16.msra.mxu0 %v871
        %946 = vmatpush.bf16.msra.mxu0 %v870
        %947 = vmatmul.bf16.gmra.mxu0 %v667
        %v948 = vpop.f32.mrf.mxu0
        %v949 = vadd.f32 %v936, %v948
        %v950 = vpop.f32.mrf.mxu0
        %951 = vdwg.mxu0
        %952 = vmatpush.bf16.msra.mxu0 %v885
        %953 = vmatpush.bf16.msra.mxu0 %v884
        %954 = vmatpush.bf16.msra.mxu0 %v883
        %955 = vmatpush.bf16.msra.mxu0 %v882
        %956 = vmatpush.bf16.msra.mxu0 %v881
        %957 = vmatpush.bf16.msra.mxu0 %v880
        %958 = vmatpush.bf16.msra.mxu0 %v879
        %959 = vmatpush.bf16.msra.mxu0 %v878
        %960 = vmatmul.bf16.gmra.mxu0 %v668
        %v961 = vpop.f32.mrf.mxu0
        %v962 = vadd.f32 %v949, %v961
        %v963 = vpop.f32.mrf.mxu0
        %964 = vdwg.mxu0
        %965 = vmatpush.bf16.msra.mxu0 %v893
        %966 = vmatpush.bf16.msra.mxu0 %v892
        %967 = vmatpush.bf16.msra.mxu0 %v891
        %968 = vmatpush.bf16.msra.mxu0 %v890
        %969 = vmatpush.bf16.msra.mxu0 %v889
        %970 = vmatpush.bf16.msra.mxu0 %v888
        %971 = vmatpush.bf16.msra.mxu0 %v887
        %972 = vmatpush.bf16.msra.mxu0 %v886
        %973 = vmatmul.bf16.gmra.mxu0 %v669
        %v974 = vpop.f32.mrf.mxu0
        %v975 = vadd.f32 %v962, %v974
        %v976 = vpop.f32.mrf.mxu0
        %977 = vdwg.mxu0
        %v978 = vlog2.pop %v975
        %v979 = vmul.f32 %v978, 0.6931472
        %980 = vst [vmem:[%s221] sm:$0xff] %v979
        %s981 = sand.u32 %s97, 1
        %s982 = scalar_lea.sflag [#allocation4], %s981
        %s983 = sand.u32 %s97, 1
        %s984 = smul.addr %s983, 8
        %s985 = scalar_lea.vmem [#allocation8], %s984
        // Predicated region
        $region45: #{tpu_custom_call.1} parent=31 // pred_check
          %p986 = pneg %p107
        $region46: #{tpu_custom_call.1} parent=31 // pred_check_branch
          %988 = sbr.rel (%p986) target = $region48
        $region47: #{tpu_custom_call.1} parent=31 // pred_region
          %990 = vsyncadd %s982, 0
          %s991 = smul.addr %s21, 8
          %s992 = scalar_lea.hbm %s3, %s991
          %s994 = sshll.u32 %s985, 4
          %s995 = int_to_ptr.vmem [resolvable:$true] %s994
          %s996 = sshll.u32 %s992, 4
          %s997 = int_to_ptr.hbm [resolvable:$true] %s996
          %999 = dma.vmem_to_hbm [thread:$0]  %s995, 128, %s997, %s982
        $region48: #{tpu_custom_call.1} parent=31 // pred_fallthru
          _
      $region32: #{tpu_custom_call.1} parent=5 // pred_fallthru
        _
      %p1000 = scmp.le.s32.totalorder 2, %s16
      // Predicated region
      $region49: #{tpu_custom_call.1} parent=5 // pred_check
        %p1001 = pneg %p1000
      $region50: #{tpu_custom_call.1} parent=5 // pred_check_branch
        %1003 = sbr.rel (%p1001) target = $region52
      $region51: #{tpu_custom_call.1} parent=5 // pred_region
        %s1004 = ssub.s32 %s16, 2
        // Predicated region
        $region53: #{tpu_custom_call.1} parent=51 // pred_check
          %p1005 = pneg %p113
        $region54: #{tpu_custom_call.1} parent=51 // pred_check_branch
          %1007 = sbr.rel (%p1005) target = $region56
        $region55: #{tpu_custom_call.1} parent=51 // pred_region
          %s1008 = sand.u32 %s98, 1
          %s1009 = scalar_lea.sflag [#allocation4], %s1008
          %s1010 = sand.u32 %s98, 1
          %s1011 = smul.addr %s1010, 8
          %s1012 = scalar_lea.vmem [#allocation8], %s1011
          %1014 = dma.done %s1009, 128
        $region56: #{tpu_custom_call.1} parent=51 // pred_fallthru
          _
      $region52: #{tpu_custom_call.1} parent=5 // pred_fallthru
        _
    $region6: #{tpu_custom_call.1} parent=1 // loop_footer
      %s20 = sadd.s32 1, %s16
    $region7: #{tpu_custom_call.1} parent=1 // loop_footer_branch
      %15 = sbr.rel target = $region3
    $region8: #{tpu_custom_call.1} parent=1 // loop_exit
      _
    %1015 = vsyncpa [#allocation3], 1
    %s1016 = scalar_lea.sflag [#allocation3], 1
    %1017 = vsyncpa %s1016, 1
    %1018 = vsyncpa [#allocation6], 1
    %1019 = vsyncpa [#allocation4], 1
    %s1020 = scalar_lea.sflag [#allocation4], 1
    %1021 = vsyncpa %s1020, 1

</llo_original>
